<compile_context>
chip_gen: v5e
topology: v5e:2x2
jax: 0.10.0
libtpu: 0.0.40
codegen_flags: <defaults>
</compile_context>

<pallas_src>
import functools

import jax
import jax.numpy as jnp
from jax import lax
from jax.experimental import pallas as pl
from jax.experimental.pallas import tpu as pltpu

_NEG_BIG = -1.0e30     # Python float -> jaxpr literal (never a captured jnp constant)
_RES_STRIP = 128       # in-kernel row-strip size for the VMEM-resident path


def _round_up(x, m):
    return ((x + m - 1) // m) * m


def _vmem_capacity_bytes():
    """Physical VMEM per core (generation aware) with a conservative fallback."""
    try:
        get_info = getattr(pltpu, "get_tpu_info", None)
        if get_info is not None:
            cap = int(getattr(get_info(), "vmem_capacity_bytes", 0) or 0)
            if cap > 0:
                return cap
    except Exception:
        pass
    return 64 * 1024 * 1024  # v7x-sized fallback (most restrictive generation)


def _fast_recip(x):
    """One EUP vrcp estimate + 2 Newton-Raphson steps (f32 accuracy, O(N) work)."""
    r = pl.reciprocal(x, approx=True)
    r = r * (2.0 - x * r)
    r = r * (2.0 - x * r)
    return r


# ---------------------------------------------------------------------------
# Path 1: VMEM-resident (single HBM read).  Whole [n, n] matrix is one VMEM
# block; strip loops keep live temporaries at O(strip * n).
# ---------------------------------------------------------------------------
def _resident_kernel(sim_ref, lse_ref, colmax_ref, colscale_ref, *,
                     inv_temp, n, strip):
    n_full = n // strip
    rem = n - n_full * strip

    colmax_ref[...] = jnp.full(colmax_ref.shape, _NEG_BIG, jnp.float32)
    colscale_ref[...] = jnp.zeros(colscale_ref.shape, jnp.float32)

    # ---- Phase A: online per-column max / sum of exp(sim/temp) --------------
    def col_update(z):                                       # z: [rows, n] f32
        m_old = colmax_ref[...]
        m_new = jnp.maximum(m_old, jnp.max(z, axis=0, keepdims=True))
        colscale_ref[...] = (colscale_ref[...] * jnp.exp(m_old - m_new)
                             + jnp.sum(jnp.exp(z - m_new), axis=0, keepdims=True))
        colmax_ref[...] = m_new

    if n_full > 0:
        def body_a(r, carry):
            start = pl.multiple_of(r * strip, strip)
            col_update(sim_ref[pl.ds(start, strip), :].astype(jnp.float32) * inv_temp)
            return carry
        lax.fori_loop(0, n_full, body_a, 0)
    if rem > 0:  # exact static remainder slice -> no masking, no OOB reads
        col_update(sim_ref[pl.ds(n_full * strip, rem), :].astype(jnp.float32) * inv_temp)

    # colscale := n / sum_rows exp(sim/temp - colmax)
    colscale_ref[...] = _fast_recip(colscale_ref[...]) * float(n)

    # ---- Phase B: per-row log-sum-exp of sim2 --------------------------------
    def row_update(start, rows):
        s = sim_ref[pl.ds(start, rows), :].astype(jnp.float32)
        s2 = (s * jnp.exp(s * inv_temp - colmax_ref[...])) * colscale_ref[...]
        m1 = jnp.max(s2, axis=-1, keepdims=True)
        lse = jnp.log(jnp.sum(jnp.exp(s2 - m1), axis=-1, keepdims=True)) + m1
        lse_ref[pl.ds(start, rows), :] = lse

    if n_full > 0:
        def body_b(r, carry):
            row_update(pl.multiple_of(r * strip, strip), strip)
            return carry
        lax.fori_loop(0, n_full, body_b, 0)
    if rem > 0:
        row_update(n_full * strip, rem)


def _dsl_resident(sim, inv_temp, n, vmem_limit):
    kernel = functools.partial(_resident_kernel, inv_temp=inv_temp, n=n,
                               strip=_RES_STRIP)
    lse, colmax, colscale = pl.pallas_call(
        kernel,
        out_shape=(jax.ShapeDtypeStruct((n, 1), jnp.float32),
                   jax.ShapeDtypeStruct((1, n), jnp.float32),
                   jax.ShapeDtypeStruct((1, n), jnp.float32)),
        in_specs=[pl.BlockSpec((n, n), lambda: (0, 0))],
        out_specs=(pl.BlockSpec((n, 1), lambda: (0, 0)),
                   pl.BlockSpec((1, n), lambda: (0, 0)),
                   pl.BlockSpec((1, n), lambda: (0, 0))),
        compiler_params=pltpu.CompilerParams(vmem_limit_bytes=vmem_limit),
    )(sim)
    return lse[:, 0], colmax[0], colscale[0]


# ---------------------------------------------------------------------------
# Path 2: large N -- two streaming passes, no padding, cdiv grids.
# ---------------------------------------------------------------------------
def _col_stats_kernel(sim_ref, colmax_ref, colscale_ref, *, inv_temp, n, tile):
    """Pass 1: online column-softmax stats.  Grid = (col blocks, row tiles)."""
    k = pl.program_id(1)

    @pl.when(k == 0)
    def _init():
        colmax_ref[...] = jnp.full(colmax_ref.shape, _NEG_BIG, jnp.float32)
        colscale_ref[...] = jnp.zeros(colscale_ref.shape, jnp.float32)

    z = sim_ref[...].astype(jnp.float32) * inv_temp            # [tile, cb]
    rows_g = lax.broadcasted_iota(jnp.int32, z.shape, 0) + k * tile
    z = jnp.where(rows_g < n, z, _NEG_BIG)                      # mask BEFORE exp

    m_old = colmax_ref[...]
    m_new = jnp.maximum(m_old, jnp.max(z, axis=0, keepdims=True))
    colscale_ref[...] = (colscale_ref[...] * jnp.exp(m_old - m_new)
                         + jnp.sum(jnp.exp(z - m_new), axis=0, keepdims=True))
    colmax_ref[...] = m_new

    @pl.when(k == pl.num_programs(1) - 1)
    def _finalize():
        colscale_ref[...] = _fast_recip(colscale_ref[...]) * float(n)


def _row_lse_kernel(sim_ref, colmax_ref, colscale_ref, lse_ref, *, inv_temp):
    """Pass 2: per row strip, rebuild sim2 and take the row log-sum-exp."""
    s = sim_ref[...].astype(jnp.float32)                        # [tile, n]
    s2 = (s * jnp.exp(s * inv_temp - colmax_ref[...])) * colscale_ref[...]
    m1 = jnp.max(s2, axis=-1, keepdims=True)
    lse_ref[...] = jnp.log(jnp.sum(jnp.exp(s2 - m1), axis=-1, keepdims=True)) + m1


def _pick_row_tile(n, itemsize, budget):
    # ~4 live f32 [tile, n] temporaries + 2 double-buffered input strips.
    tile = 512
    while tile > 128 and tile * n * (16 + 2 * itemsize) > budget:
        tile //= 2
    # TODO(synk): for very large N (a [128, N] f32 strip no longer fits VMEM,
    # N >~ 10k on v7x) add a column-tiled pass 2 with an online row-LSE instead
    # of shrinking the row tile further.
    return n if tile >= n else tile


def _dsl_tiled(sim, inv_temp, n, vmem_limit, row_tile=None):
    itemsize = jnp.dtype(sim.dtype).itemsize
    tile = row_tile if row_tile is not None else _pick_row_tile(n, itemsize, vmem_limit // 2)
    nrt = pl.cdiv(n, tile)
    # Two column blocks so pass 1's "parallel" axis can feed both v7x TensorCores.
    cb = n if n <= 256 else min(n, _round_up(pl.cdiv(n, 2), 128))
    ncb = pl.cdiv(n, cb)

    colmax, colscale = pl.pallas_call(
        functools.partial(_col_stats_kernel, inv_temp=inv_temp, n=n, tile=tile),
        out_shape=(jax.ShapeDtypeStruct((1, n), jnp.float32),
                   jax.ShapeDtypeStruct((1, n), jnp.float32)),
        grid=(ncb, nrt),
        in_specs=[pl.BlockSpec((tile, cb), lambda j, k: (k, j))],
        out_specs=(pl.BlockSpec((1, cb), lambda j, k: (0, j)),
                   pl.BlockSpec((1, cb), lambda j, k: (0, j))),
        compiler_params=pltpu.CompilerParams(
            dimension_semantics=("parallel", "arbitrary"),
            vmem_limit_bytes=vmem_limit),
    )(sim)

    lse = pl.pallas_call(
        functools.partial(_row_lse_kernel, inv_temp=inv_temp),
        out_shape=jax.ShapeDtypeStruct((n, 1), jnp.float32),
        grid=(nrt,),
        in_specs=[pl.BlockSpec((tile, n), lambda i: (i, 0)),
                  pl.BlockSpec((1, n), lambda i: (0, 0)),
                  pl.BlockSpec((1, n), lambda i: (0, 0))],
        out_specs=pl.BlockSpec((tile, 1), lambda i: (i, 0)),
        compiler_params=pltpu.CompilerParams(
            dimension_semantics=("parallel",),
            vmem_limit_bytes=vmem_limit),
    )(sim, colmax, colscale)

    return lse[:, 0], colmax[0], colscale[0]


# ---------------------------------------------------------------------------
# Public wrapper (matches PyTorch dual_softmax_loss.forward).
# ---------------------------------------------------------------------------
def dual_softmax_loss(sim_matrix, temp=1000.0, *, force_path=None, row_tile=None):
    """loss[i] = -log_softmax(sim * softmax(sim/temp, dim=0) * N, dim=-1)[i, i]."""
    n = sim_matrix.shape[0]
    assert sim_matrix.ndim == 2 and sim_matrix.shape == (n, n), \
        "sim_matrix must be square [N, N]"
    inv_temp = 1.0 / float(temp)
    itemsize = jnp.dtype(sim_matrix.dtype).itemsize

    cap = _vmem_capacity_bytes()
    vmem_limit = min(int(cap * 0.625), 96 * 1024 * 1024)

    # Resident path if the whole matrix + strip temporaries fit comfortably.
    need = n * n * itemsize + 8 * min(_RES_STRIP, max(8, n)) * n * 4 + (2 << 20)
    use_resident = need <= int(vmem_limit * 0.85)
    if force_path == "resident":
        use_resident = True
    elif force_path == "tiled":
        use_resident = False

    if use_resident:
        lse, colmax, colscale = _dsl_resident(sim_matrix, inv_temp, n, vmem_limit)
    else:
        lse, colmax, colscale = _dsl_tiled(sim_matrix, inv_temp, n, vmem_limit, row_tile)

    # O(N) epilogue: sim2_ii = d_i * exp(d_i/temp - colmax_i) * (n / colsum_i)
    d = jnp.diagonal(sim_matrix).astype(jnp.float32)
    return lse - d * jnp.exp(d * inv_temp - colmax) * colscale


def _reference(sim_matrix, temp=1000.0):
    sim = jnp.asarray(sim_matrix, jnp.float32)
    n = sim.shape[0]
    sim2 = sim * jax.nn.softmax(sim / temp, axis=0) * n
    return -jnp.diag(jax.nn.log_softmax(sim2, axis=-1))


if __name__ == "__main__":
    key = jax.random.PRNGKey(0)
    k1, k2, k3 = jax.random.split(key, 3)

    # 1) Tiny batch -> resident path, static-remainder-only code path.
    n1 = 8
    s1 = jax.random.normal(k1, (n1, n1), dtype=jnp.float32)
    l1 = jax.block_until_ready(dual_softmax_loss(s1, temp=1000))
    r1 = _reference(s1, 1000.0)
    assert l1.shape == (n1,)
    assert jnp.allclose(l1, r1, atol=2e-5, rtol=2e-5), float(jnp.max(jnp.abs(l1 - r1)))

    # 2) Non-128-multiple medium batch -> resident path, strip loop + remainder.
    n2 = 320
    s2 = jax.random.normal(k2, (n2, n2), dtype=jnp.float32)
    l2 = jax.block_until_ready(dual_softmax_loss(s2, temp=1000))
    r2 = _reference(s2, 1000.0)
    assert l2.shape == (n2,)
    assert jnp.allclose(l2, r2, atol=1e-4, rtol=1e-4), float(jnp.max(jnp.abs(l2 - r2)))

    # 3) Force the large-N tiled path at a small size to exercise the cdiv grids,
    #    partial row tiles and partial column blocks (no padding anywhere).
    n3 = 200
    s3 = jax.random.normal(k3, (n3, n3), dtype=jnp.float32)
    l3 = jax.block_until_ready(
        dual_softmax_loss(s3, temp=1000, force_path="tiled", row_tile=64))
    r3 = _reference(s3, 1000.0)
    assert l3.shape == (n3,)
    assert jnp.allclose(l3, r3, atol=1e-4, rtol=1e-4), float(jnp.max(jnp.abs(l3 - r3)))

    print("KERNEL_OK")
</pallas_src>

<mosaic_0001>
module attributes {stable_mosaic.version = 11 : i64} {
  func.func @_resident_kernel(%arg0: memref<8x8xf32, #tpu.memory_space<vmem>>, %arg1: memref<8x1xf32, #tpu.memory_space<vmem>>, %arg2: memref<1x8xf32, #tpu.memory_space<vmem>>, %arg3: memref<1x8xf32, #tpu.memory_space<vmem>>) attributes {dimension_semantics = [], scalar_prefetch = 0 : i64, scratch_operands = 0 : i64, tpu.core_type = #tpu.core_type<tc>} {
    %cst = arith.constant -1.000000e+30 : f32
    %0 = vector.broadcast %cst : f32 to vector<1x8xf32>
    %c0 = arith.constant 0 : index
    %c0_0 = arith.constant 0 : index
    %1 = vector.load %arg2[%c0, %c0_0] : memref<1x8xf32, #tpu.memory_space<vmem>>, vector<1x8xf32>
    tpu.vector_store %arg2[%c0, %c0_0], %0 {strides = array<i32>} : memref<1x8xf32, #tpu.memory_space<vmem>>, vector<1x8xf32>,
    %cst_1 = arith.constant 0.000000e+00 : f32
    %2 = vector.broadcast %cst_1 : f32 to vector<1x8xf32>
    %c0_2 = arith.constant 0 : index
    %c0_3 = arith.constant 0 : index
    %3 = vector.load %arg3[%c0_2, %c0_3] : memref<1x8xf32, #tpu.memory_space<vmem>>, vector<1x8xf32>
    tpu.vector_store %arg3[%c0_2, %c0_3], %2 {strides = array<i32>} : memref<1x8xf32, #tpu.memory_space<vmem>>, vector<1x8xf32>,
    %c0_4 = arith.constant 0 : index
    %c0_5 = arith.constant 0 : index
    %4 = vector.load %arg0[%c0_4, %c0_5] : memref<8x8xf32, #tpu.memory_space<vmem>>, vector<8x8xf32>
    %cst_6 = arith.constant 1.000000e-03 : f32
    %5 = vector.broadcast %cst_6 : f32 to vector<8x8xf32>
    %6 = arith.mulf %4, %5 : vector<8x8xf32>
    %c0_7 = arith.constant 0 : index
    %c0_8 = arith.constant 0 : index
    %7 = vector.load %arg2[%c0_7, %c0_8] : memref<1x8xf32, #tpu.memory_space<vmem>>, vector<1x8xf32>
    %cst_9 = arith.constant dense<0xFF800000> : vector<8xf32>
    %8 = vector.multi_reduction <maximumf>, %6, %cst_9 [0] : vector<8x8xf32> to vector<8xf32>
    %9 = vector.shape_cast %8 : vector<8xf32> to vector<1x8xf32>
    %10 = arith.maximumf %7, %9 : vector<1x8xf32>
    %c0_10 = arith.constant 0 : index
    %c0_11 = arith.constant 0 : index
    %11 = vector.load %arg3[%c0_10, %c0_11] : memref<1x8xf32, #tpu.memory_space<vmem>>, vector<1x8xf32>
    %12 = arith.subf %7, %10 : vector<1x8xf32>
    %13 = math.exp %12 : vector<1x8xf32>
    %14 = arith.mulf %11, %13 : vector<1x8xf32>
    %15 = vector.broadcast %10 : vector<1x8xf32> to vector<8x8xf32>
    %16 = arith.subf %6, %15 : vector<8x8xf32>
    %17 = math.exp %16 : vector<8x8xf32>
    %cst_12 = arith.constant dense<0.000000e+00> : vector<8xf32>
    %18 = vector.multi_reduction <add>, %17, %cst_12 [0] : vector<8x8xf32> to vector<8xf32>
    %19 = vector.shape_cast %18 : vector<8xf32> to vector<1x8xf32>
    %20 = arith.addf %14, %19 : vector<1x8xf32>
    %c0_13 = arith.constant 0 : index
    %c0_14 = arith.constant 0 : index
    %21 = vector.load %arg3[%c0_13, %c0_14] : memref<1x8xf32, #tpu.memory_space<vmem>>, vector<1x8xf32>
    tpu.vector_store %arg3[%c0_13, %c0_14], %20 {strides = array<i32>} : memref<1x8xf32, #tpu.memory_space<vmem>>, vector<1x8xf32>,
    %c0_15 = arith.constant 0 : index
    %c0_16 = arith.constant 0 : index
    %22 = vector.load %arg2[%c0_15, %c0_16] : memref<1x8xf32, #tpu.memory_space<vmem>>, vector<1x8xf32>
    tpu.vector_store %arg2[%c0_15, %c0_16], %10 {strides = array<i32>} : memref<1x8xf32, #tpu.memory_space<vmem>>, vector<1x8xf32>,
    %c0_17 = arith.constant 0 : index
    %c0_18 = arith.constant 0 : index
    %23 = vector.load %arg3[%c0_17, %c0_18] : memref<1x8xf32, #tpu.memory_space<vmem>>, vector<1x8xf32>
    %24 = tpu.reciprocal %23 {approx = true} : vector<1x8xf32> -> vector<1x8xf32>
    %25 = arith.mulf %23, %24 : vector<1x8xf32>
    %cst_19 = arith.constant 2.000000e+00 : f32
    %26 = vector.broadcast %cst_19 : f32 to vector<1x8xf32>
    %27 = arith.subf %26, %25 : vector<1x8xf32>
    %28 = arith.mulf %24, %27 : vector<1x8xf32>
    %29 = arith.mulf %23, %28 : vector<1x8xf32>
    %cst_20 = arith.constant 2.000000e+00 : f32
    %30 = vector.broadcast %cst_20 : f32 to vector<1x8xf32>
    %31 = arith.subf %30, %29 : vector<1x8xf32>
    %32 = arith.mulf %28, %31 : vector<1x8xf32>
    %cst_21 = arith.constant 8.000000e+00 : f32
    %33 = vector.broadcast %cst_21 : f32 to vector<1x8xf32>
    %34 = arith.mulf %32, %33 : vector<1x8xf32>
    %c0_22 = arith.constant 0 : index
    %c0_23 = arith.constant 0 : index
    %35 = vector.load %arg3[%c0_22, %c0_23] : memref<1x8xf32, #tpu.memory_space<vmem>>, vector<1x8xf32>
    tpu.vector_store %arg3[%c0_22, %c0_23], %34 {strides = array<i32>} : memref<1x8xf32, #tpu.memory_space<vmem>>, vector<1x8xf32>,
    %c0_24 = arith.constant 0 : index
    %c0_25 = arith.constant 0 : index
    %36 = vector.load %arg0[%c0_24, %c0_25] : memref<8x8xf32, #tpu.memory_space<vmem>>, vector<8x8xf32>
    %cst_26 = arith.constant 1.000000e-03 : f32
    %37 = vector.broadcast %cst_26 : f32 to vector<8x8xf32>
    %38 = arith.mulf %36, %37 : vector<8x8xf32>
    %c0_27 = arith.constant 0 : index
    %c0_28 = arith.constant 0 : index
    %39 = vector.load %arg2[%c0_27, %c0_28] : memref<1x8xf32, #tpu.memory_space<vmem>>, vector<1x8xf32>
    %40 = vector.broadcast %39 : vector<1x8xf32> to vector<8x8xf32>
    %41 = arith.subf %38, %40 : vector<8x8xf32>
    %42 = math.exp %41 : vector<8x8xf32>
    %43 = arith.mulf %36, %42 : vector<8x8xf32>
    %c0_29 = arith.constant 0 : index
    %c0_30 = arith.constant 0 : index
    %44 = vector.load %arg3[%c0_29, %c0_30] : memref<1x8xf32, #tpu.memory_space<vmem>>, vector<1x8xf32>
    %45 = vector.broadcast %44 : vector<1x8xf32> to vector<8x8xf32>
    %46 = arith.mulf %43, %45 : vector<8x8xf32>
    %cst_31 = arith.constant dense<0xFF800000> : vector<8xf32>
    %47 = vector.multi_reduction <maximumf>, %46, %cst_31 [1] : vector<8x8xf32> to vector<8xf32>
    %48 = vector.shape_cast %47 : vector<8xf32> to vector<8x1xf32>
    %49 = vector.broadcast %48 : vector<8x1xf32> to vector<8x8xf32>
    %50 = arith.subf %46, %49 : vector<8x8xf32>
    %51 = math.exp %50 : vector<8x8xf32>
    %cst_32 = arith.constant dense<0.000000e+00> : vector<8xf32>
    %52 = vector.multi_reduction <add>, %51, %cst_32 [1] : vector<8x8xf32> to vector<8xf32>
    %53 = vector.shape_cast %52 : vector<8xf32> to vector<8x1xf32>
    %54 = math.log %53 : vector<8x1xf32>
    %55 = arith.addf %54, %48 : vector<8x1xf32>
    %c0_33 = arith.constant 0 : index
    %c0_34 = arith.constant 0 : index
    %56 = vector.load %arg1[%c0_33, %c0_34] : memref<8x1xf32, #tpu.memory_space<vmem>>, vector<8x1xf32>
    tpu.vector_store %arg1[%c0_33, %c0_34], %55 {strides = array<i32>} : memref<8x1xf32, #tpu.memory_space<vmem>>, vector<8x1xf32>,
    return
  }
}

</mosaic_0001>

<llo_original>
// kernel: tpu_custom_call.1
$region0: #{tpu_custom_call.1}
  #allocation0 [shape = 'u32[]', space=smem, size = 0x4, offset = 0x4, fixed_abs, tag = 'smem constant byte address 0x4 - core index']
  #allocation1 [shape = 'u32[72,128]{1,0:T(1,128)}', space=vmem, size = 0x9000, scoped, tag = 'internal scratch']
  %s0 = inlined_call_operand.hbm [shape: f32[8,8], index: 0, kind: input, shape index: {}]
  %s1 = inlined_call_operand.vmem [shape: f32[8,1], index: 1, kind: output, shape index: {0}]
  %s2 = inlined_call_operand.hbm [shape: f32[1,8], index: 2, kind: output, shape index: {1}]
  %s3 = inlined_call_operand.hbm [shape: f32[1,8], index: 3, kind: output, shape index: {2}]
  %4 = xla_tuple %s1, %s2, %s3
  %s5 = sld [smem:[#allocation0]]
  $region34: #{tpu_custom_call.1} parent=0
    _
  %s7 = ssub.s32 1, %s5
  %s8 = scalar_select 0, %s7, %s5
  $region1: #{tpu_custom_call.1} parent=0
    #allocation2 [shape = 'u8[4096]{0}', space=vmem, size = 0x1000, scoped, tag = 'input window, operand 0, single buffered']
    #allocation3 [shape = 's32[1]{0}', space=sflag, size = 0x4, scoped, tag = 'scoped memory for tpu_custom_call.1']
    #allocation4 [shape = 's32[1]{0}', space=sflag, size = 0x4, scoped, tag = 'scoped memory for tpu_custom_call.1']
    #allocation5 [shape = 'u8[512]{0}', space=vmem, size = 0x400, scoped, tag = 'output window, operand 1, single buffered']
    #allocation6 [shape = 'u8[512]{0}', space=vmem, size = 0x400, scoped, tag = 'output window, operand 2, single buffered']
    #allocation7 [shape = 's32[1]{0}', space=sflag, size = 0x4, scoped, tag = 'scoped memory for tpu_custom_call.1']
    %9 = vsyncpa [#allocation3], 0
    %10 = vsyncpa [#allocation4], 0
    %11 = vsyncpa [#allocation7], 0
    // Predicated region
    $region2: #{tpu_custom_call.1} parent=1 // pred_check
      _
    $region3: #{tpu_custom_call.1} parent=1 // pred_check_branch
      %13 = sbr.rel (0) target = $region5
    $region4: #{tpu_custom_call.1} parent=1 // pred_region
      %15 = vsyncadd [#allocation3], 0
      %s17 = sshll.u32 %s0, 4
      %s18 = int_to_ptr.hbm [resolvable:$true] %s17
      %s19 = sshll.u32 [#allocation2], 4
      %s20 = int_to_ptr.vmem [resolvable:$true] %s19
      %22 = dma.hbm_to_vmem [thread:$0]  %s18, 128, %s20, [#allocation3]
    $region5: #{tpu_custom_call.1} parent=1 // pred_fallthru
      _
    // Predicated region
    $region6: #{tpu_custom_call.1} parent=1 // pred_check
      _
    $region7: #{tpu_custom_call.1} parent=1 // pred_check_branch
      %24 = sbr.rel (0) target = $region9
    $region8: #{tpu_custom_call.1} parent=1 // pred_region
      %26 = dma.done [#allocation3], 128
    $region9: #{tpu_custom_call.1} parent=1 // pred_fallthru
      _
    %vm27 = vcmask 57344
    %28 = vst.msk [vmem:[#allocation5] sm:$0x1] %vm27, -1e+30
    %29 = vst.msk [vmem:[#allocation6] sm:$0x1] %vm27, 0.0
    %v30 = vld [vmem:[#allocation2] sm:$0xff]
    %v31 = vmul.f32 %v30, 0.001
    %v32 = vld [vmem:[#allocation5] sm:$0x1]
    %vm33 = vcmask 64512
    %v34 = vsel %vm33, %v31, -inf
    %v35 = vrot.slane %v34, 4
    %v36 = vmax.f32 %v34, %v35
    %v37 = vrot.slane %v36, 2
    %v38 = vmax.f32 %v36, %v37
    %v39 = vrot.slane %v38, 1
    %v40 = vmax.f32 %v38, %v39
    %v41 = vmax.f32 %v32, %v40
    %v42 = vld [vmem:[#allocation6] sm:$0x1]
    %v43 = vsub.f32 %v32, %v41
    %v44 = vmul.f32 %v43, 1.442695
    %v45 = vpow.pop %v44
    %v46 = vmul.f32 %v42, %v45
    %v48 = vperm.slane %v41, 0
    %v50 = vsub.f32 %v31, %v48
    %v51 = vmul.f32 %v50, 1.442695
    %v52 = vpow.pop %v51
    %v53 = vsel %vm33, %v52, 0.0
    %v54 = vrot.slane %v53, 4
    %v55 = vadd.f32 %v53, %v54
    %v56 = vrot.slane %v55, 2
    %v57 = vadd.f32 %v55, %v56
    %v58 = vrot.slane %v57, 1
    %v59 = vadd.f32 %v57, %v58
    %v60 = vadd.f32 %v46, %v59
    %61 = vst.msk [vmem:[#allocation6] sm:$0x1] %vm27, %v60
    %62 = vst.msk [vmem:[#allocation5] sm:$0x1] %vm27, %v41
    %v63 = vld [vmem:[#allocation6] sm:$0x1]
    %v64 = vrcp.pop %v63
    %v65 = vmul.f32 %v63, %v64
    %v66 = vsub.f32 2.0, %v65
    %v67 = vmul.f32 %v64, %v66
    %v68 = vmul.f32 %v63, %v67
    %v69 = vsub.f32 2.0, %v68
    %v70 = vmul.f32 %v67, %v69
    %v71 = vmul.f32 %v70, 8.0
    %72 = vst.msk [vmem:[#allocation6] sm:$0x1] %vm27, %v71
    %v73 = vld [vmem:[#allocation2] sm:$0xff]
    %v74 = vmul.f32 %v73, 0.001
    %v75 = vld [vmem:[#allocation5] sm:$0x1]
    %v77 = vperm.slane %v75, 0
    %v79 = vsub.f32 %v74, %v77
    %v80 = vmul.f32 %v79, 1.442695
    %v81 = vpow.pop %v80
    %v82 = vmul.f32 %v73, %v81
    %v83 = vld [vmem:[#allocation6] sm:$0x1]
    %v85 = vperm.slane %v83, 0
    %v87 = vmul.f32 %v82, %v85
    %v88 = vsel %vm33, %v87, -inf
    %89 = vmax.xlane.f32.xlu0 %v88
    %v90 = vpop.xlane.xlu0 %89
    %v91 = vsub.f32 %v87, %v90
    %v92 = vmul.f32 %v91, 1.442695
    %v93 = vpow.pop %v92
    %v94 = vsel %vm33, %v93, 0.0
    %95 = vadd.xlane.f32.xlu0 %v94
    %v96 = vpop.xlane.xlu0 %95
    %v97 = vlog2.pop %v96
    %v98 = vmul.f32 %v97, 0.6931472
    %v99 = vadd.f32 %v98, %v90
    %vm100 = vcmask 7168
    %101 = vst.msk [vmem:[%s1] sm:$0xff] %vm100, %v99
    // Predicated region
    $region10: #{tpu_custom_call.1} parent=1 // pred_check
      _
    $region11: #{tpu_custom_call.1} parent=1 // pred_check_branch
      %103 = sbr.rel (0) target = $region13
    $region12: #{tpu_custom_call.1} parent=1 // pred_region
      _
    $region13: #{tpu_custom_call.1} parent=1 // pred_fallthru
      _
    // Predicated region
    $region14: #{tpu_custom_call.1} parent=1 // pred_check
      _
    $region15: #{tpu_custom_call.1} parent=1 // pred_check_branch
      %105 = sbr.rel (0) target = $region17
    $region16: #{tpu_custom_call.1} parent=1 // pred_region
      %107 = vsyncadd [#allocation4], 0
      %s109 = sshll.u32 [#allocation5], 4
      %s110 = int_to_ptr.vmem [resolvable:$true] %s109
      %s111 = sshll.u32 %s2, 4
      %s112 = int_to_ptr.hbm [resolvable:$true] %s111
      %114 = dma.vmem_to_hbm [thread:$0]  %s110, 16, %s112, [#allocation4]
    $region17: #{tpu_custom_call.1} parent=1 // pred_fallthru
      _
    // Predicated region
    $region18: #{tpu_custom_call.1} parent=1 // pred_check
      _
    $region19: #{tpu_custom_call.1} parent=1 // pred_check_branch
      %116 = sbr.rel (0) target = $region21
    $region20: #{tpu_custom_call.1} parent=1 // pred_region
      %118 = vsyncadd [#allocation7], 0
      %s120 = sshll.u32 [#allocation6], 4
      %s121 = int_to_ptr.vmem [resolvable:$true] %s120
      %s122 = sshll.u32 %s3, 4
      %s123 = int_to_ptr.hbm [resolvable:$true] %s122
      %125 = dma.vmem_to_hbm [thread:$0]  %s121, 16, %s123, [#allocation7]
    $region21: #{tpu_custom_call.1} parent=1 // pred_fallthru
      _
    // Predicated region
    $region22: #{tpu_custom_call.1} parent=1 // pred_check
      _
    $region23: #{tpu_custom_call.1} parent=1 // pred_check_branch
      %127 = sbr.rel (0) target = $region25
    $region24: #{tpu_custom_call.1} parent=1 // pred_region
      _
    $region25: #{tpu_custom_call.1} parent=1 // pred_fallthru
      _
    // Predicated region
    $region26: #{tpu_custom_call.1} parent=1 // pred_check
      _
    $region27: #{tpu_custom_call.1} parent=1 // pred_check_branch
      %129 = sbr.rel (0) target = $region29
    $region28: #{tpu_custom_call.1} parent=1 // pred_region
      %131 = dma.done [#allocation4], 16
    $region29: #{tpu_custom_call.1} parent=1 // pred_fallthru
      _
    // Predicated region
    $region30: #{tpu_custom_call.1} parent=1 // pred_check
      _
    $region31: #{tpu_custom_call.1} parent=1 // pred_check_branch
      %133 = sbr.rel (0) target = $region33
    $region32: #{tpu_custom_call.1} parent=1 // pred_region
      %135 = dma.done [#allocation7], 16
    $region33: #{tpu_custom_call.1} parent=1 // pred_fallthru
      _
    %136 = vsyncpa [#allocation3], 1
    %137 = vsyncpa [#allocation4], 1
    %138 = vsyncpa [#allocation7], 1

</llo_original>
